<compile_context>
chip_gen: v7x
topology: tpu7x:2x2x1
jax: 0.10.0
libtpu: 0.0.40
codegen_flags: <defaults>
</compile_context>

<pallas_src>
import jax
import jax.numpy as jnp
import numpy as np
from jax import lax
from jax.experimental import pallas as pl
from jax.experimental.pallas import tpu as pltpu

_MiB = 1024 * 1024


def _round_up(x, m):
    return (x + m - 1) // m * m


def _tpu_budgets():
    """Per-generation (feat_tile_budget_bytes, vmem_limit_bytes)."""
    kind = ""
    try:
        kind = jax.devices()[0].device_kind.lower()
    except Exception:
        pass
    vmem_phys = None
    try:
        vmem_phys = int(pltpu.get_tpu_info().vmem_capacity_bytes)
    except Exception:
        pass
    if vmem_phys is None:
        vmem_phys = 64 * _MiB if ("v7" in kind or "7x" in kind) else 128 * _MiB

    if vmem_phys <= 64 * _MiB:
        # v7x: only 64 MiB per TensorCore -> keep double-buffered tiles + f32 temps under ~48 MiB.
        return 8 * _MiB, 48 * _MiB
    if "v5" in kind:
        # v5e: ~0.8 TB/s HBM, 128 MiB VMEM; 8 MiB tiles already sit on the roofline plateau.
        return 8 * _MiB, 64 * _MiB
    # v6e / other 128 MiB parts: plenty of headroom, larger tiles amortize per-step overhead.
    return 12 * _MiB, 64 * _MiB


def _auto_block_n(n, d, itemsize, tile_budget_bytes):
    """Bytes-based tile sizing using the lane-padded VMEM row footprint."""
    n8 = _round_up(max(n, 1), 8)
    # VMEM rows are lane-padded to 128 lanes; the dominant in-kernel temporaries are f32, so
    # budget with max(itemsize, 4) to stay conservative for bf16/fp8 inputs.
    row_bytes = _round_up(max(d, 1), 128) * max(itemsize, 4)
    bn = (tile_budget_bytes // row_bytes) // 128 * 128
    bn = max(bn, 512)   # stay well clear of the ~0.35us/step overhead regime
    if n8 > 4096:
        # Prefer >= 2 tiles so the "parallel" split can engage both v7x TensorCores while each
        # tile stays comfortably above the per-step-overhead regime.
        bn = min(bn, _round_up(-(-n8 // 2), 128))
    if n8 <= bn:
        return n8       # a single tile (per split) covers everything
    return bn


def _hug_mhe_kernel(feat_ref, w_ref, tgt_ref, acc_ref, ww_ref, wnorm_ref):
    """Grid = (split, tile). acc_ref holds [dist_sum; count] per class for this split."""
    i = pl.program_id(1)
    C, D = wnorm_ref.shape

    # ---------------- one-time work at the start of each split's stream ----------------
    @pl.when(i == 0)
    def _init():
        acc_ref[...] = jnp.zeros_like(acc_ref)

        w = w_ref[...].astype(jnp.float32)                                   # (C, D)
        # rsqrt -> EUP slot; broadcasted multiply -> VPU (no divide). eps guards zero rows.
        w_n = w * lax.rsqrt(jnp.maximum(jnp.sum(w * w, axis=1, keepdims=True), 1e-30))
        wnorm_ref[...] = w_n.astype(wnorm_ref.dtype)                         # reused every tile

        # weight_wise: Gram without an explicit transpose (contract last dim of both operands).
        gram = lax.dot_general(w_n, w_n, (((1,), (1,)), ((), ())),
                               preferred_element_type=jnp.float32)
        d2 = jnp.maximum(2.0 - 2.0 * gram, 0.0)                              # ||wi - wj||^2
        row = lax.broadcasted_iota(jnp.int32, (C, C), 0)
        col = lax.broadcasted_iota(jnp.int32, (C, C), 1)
        mask = jnp.logical_and(col > row, d2 > 0.0)
        inv = jnp.where(mask, 1.0 / jnp.where(mask, d2, 1.0), 0.0)
        ww_ref[0, 0] = jnp.sum(inv) / jnp.maximum(jnp.sum(mask.astype(jnp.float32)), 1.0)

    # ---------------- per-tile streaming work ----------------
    f = feat_ref[...]                                                        # (TN, D) native dtype
    f32 = f.astype(jnp.float32)

    # Per-sample squared norm, produced lane-dense as (1, TN) via a tiny transpose-free matmul
    # (avoids a cross-lane reduce and a (TN,1)->(1,TN) relayout).
    sumsq = lax.dot_general(jnp.ones((1, D), jnp.float32), f32 * f32,
                            (((1,), (1,)), ((), ())),
                            preferred_element_type=jnp.float32)              # (1, TN)
    inv_norm = lax.rsqrt(jnp.maximum(sumsq, 1e-30))                          # (1, TN)

    # (C, TN) inner products against the *raw* feat tile, then post-scale the columns by 1/||f||
    # (skips the normalized-feat temporary and its recast; ragged/garbage columns are scrubbed
    # by the target mask below).
    w_n = wnorm_ref[...]
    f_mx = f if f.dtype == w_n.dtype else f.astype(w_n.dtype)
    fw = lax.dot_general(w_n, f_mx, (((1,), (1,)), ((), ())),
                         preferred_element_type=jnp.float32) * inv_norm      # (C, TN)

    tgt = tgt_ref[...]                                                       # (1, TN), -1 = pad
    cls = lax.broadcasted_iota(jnp.int32, (C, 1), 0)                         # (C, 1) class ids
    member = cls == tgt                                                      # (C, TN) bool
    member_f = member.astype(jnp.float32)

    # Only the target-class inner product is ever used -> one sqrt per sample; the where() also
    # scrubs NaN/Inf coming from ragged / out-of-bounds feat rows before anything accumulates.
    dot_tgt = jnp.sum(jnp.where(member, fw, 0.0), axis=0, keepdims=True)     # (1, TN)
    dist = jnp.sqrt(jnp.maximum(2.0 - 2.0 * dot_tgt, 0.0))                   # (1, TN)

    # Fused per-class accumulation: one (2, TN) x (C, TN) matmul (contracting TN) gives
    # [sum of distances ; sample counts] per class, lane-dense, added into the split's output.
    stacked = jnp.concatenate([dist, jnp.ones_like(dist)], axis=0)           # (2, TN)
    upd = lax.dot_general(stacked, member_f, (((1,), (1,)), ((), ())),
                          preferred_element_type=jnp.float32)                # (2, C)
    acc_ref[...] += upd[jnp.newaxis]


def hug_mhe(feat, classifier, target, alpha=1.0, beta=1.0, block_n=None, num_splits=None):
    """Returns (sample_wise_loss * beta, weight_wise_loss * alpha, feat)."""
    N, D = feat.shape
    C, _ = classifier.shape
    itemsize = jnp.dtype(feat.dtype).itemsize

    tile_budget, vmem_limit = _tpu_budgets()
    if block_n is None:
        block_n = _auto_block_n(N, D, itemsize, tile_budget)

    # Block geometry: sublane-aligned always; lane-aligned (128) when there is more than one
    # tile (the (1, block_n) target blocks must be lane-divisible unless they span the full row).
    block_n = max(8, _round_up(min(int(block_n), _round_up(N, 8)), 8))
    if block_n < N:
        block_n = _round_up(block_n, 128)
    n_tiles = max(1, -(-N // block_n))

    # One "parallel" split per TensorCore (v7x has 2 TCs; on 1-TC parts the extra split just runs
    # sequentially with its own partial accumulators -> negligible overhead).
    if num_splits is None:
        num_splits = 2 if n_tiles >= 2 else 1
    num_splits = int(max(1, min(num_splits, n_tiles)))
    tiles_per_split = -(-n_tiles // num_splits)
    total_steps = num_splits * tiles_per_split
    padded_cols = total_steps * block_n
    last_tile = n_tiles - 1

    # feat is streamed un-padded (ragged last tile; steps past the end re-read the last tile via
    # the clamped index_map). Only the tiny target row is padded, with -1 so padded columns match
    # no class and contribute nothing.
    tgt = target.astype(jnp.int32).reshape(1, N)
    if padded_cols != N:
        tgt = jnp.pad(tgt, ((0, 0), (0, padded_cols - N)), constant_values=-1)

    # MXU compute dtype: keep matched low-precision inputs on the fast MXU path; f32 otherwise.
    # NOTE: with bf16 inputs, dist = sqrt(2 - 2*dot) loses accuracy as dot -> 1.
    compute_dtype = feat.dtype if feat.dtype == classifier.dtype else jnp.float32

    # TODO(synk): if VMEM ever forces tiles < ~1 MiB (huge D on v7x), add
    # pipeline_mode=pl.Buffered(3) on the feat BlockSpec to hide DMA issue latency.
    # TODO(synk): for C >> D, replace the (C, TN) matmul with a per-sample weight-row gather.
    acc, ww = pl.pallas_call(
        _hug_mhe_kernel,
        out_shape=(
            jax.ShapeDtypeStruct((num_splits, 2, C), jnp.float32),   # [dist_sum; count] per split
            jax.ShapeDtypeStruct((1, 1), jnp.float32),               # weight_wise
        ),
        grid=(num_splits, tiles_per_split),
        in_specs=[
            pl.BlockSpec((block_n, D),
                         lambda p, i: (jnp.minimum(p * tiles_per_split + i, last_tile), 0)),
            pl.BlockSpec((C, D), lambda p, i: (0, 0)),               # classifier, VMEM-resident
            pl.BlockSpec((1, block_n), lambda p, i: (0, p * tiles_per_split + i)),
        ],
        out_specs=(
            pl.BlockSpec((1, 2, C), lambda p, i: (p, 0, 0)),         # per-split accumulators
            pl.BlockSpec(memory_space=pltpu.SMEM),                   # scalar via SMEM
        ),
        scratch_shapes=[
            pltpu.VMEM((C, D), compute_dtype),                       # normalized classifier
        ],
        compiler_params=pltpu.CompilerParams(
            dimension_semantics=("parallel", "arbitrary"),
            vmem_limit_bytes=vmem_limit,
        ),
    )(feat, classifier, tgt)

    # Tiny JAX epilogue: reduce the per-split partials and finish the mean-of-class-means.
    dsum = jnp.sum(acc[:, 0, :], axis=0)
    cnt = jnp.sum(acc[:, 1, :], axis=0)
    present = cnt > 0.0
    per_class = jnp.where(present, dsum / jnp.maximum(cnt, 1.0), 0.0)
    num_present = jnp.maximum(jnp.sum(present.astype(jnp.float32)), 1.0)
    sample_wise = jnp.sum(per_class) / num_present

    return sample_wise * beta, ww[0, 0] * alpha, feat


def _reference(feat, classifier, target, alpha=1.0, beta=1.0):
    """Pure JAX/numpy mirror of the PyTorch forward (for verification)."""
    w = classifier / jnp.linalg.norm(classifier, axis=1, keepdims=True)
    diff = w[:, None, :] - w[None, :, :]
    d = jnp.sqrt(jnp.maximum(jnp.sum(diff * diff, axis=-1), 0.0))
    C = w.shape[0]
    mask = jnp.triu(jnp.ones((C, C), bool), k=1) & (d > 0)
    ww = jnp.sum(jnp.where(mask, 1.0 / jnp.where(mask, d * d, 1.0), 0.0)) / jnp.sum(mask)

    f = feat / jnp.linalg.norm(feat, axis=1, keepdims=True)
    tnp = np.asarray(target)
    classes = np.unique(tnp)
    total = 0.0
    for c in classes:
        fc = f[tnp == c]
        dc = jnp.sqrt(jnp.maximum(jnp.sum((fc - w[int(c)][None, :]) ** 2, axis=-1), 0.0))
        total = total + jnp.mean(dc)
    sw = total / len(classes)
    return sw * beta, ww * alpha, feat


if __name__ == "__main__":
    key = jax.random.PRNGKey(0)
    k_feat, k_cls, k_tgt = jax.random.split(key, 3)

    N, D, C = 320, 32, 8   # samples, feature dim, classes
    feat = jax.random.normal(k_feat, (N, D), dtype=jnp.float32)
    classifier = jax.random.normal(k_cls, (C, D), dtype=jnp.float32)
    target = jax.random.randint(k_tgt, (N,), 0, C, dtype=jnp.int32)

    # Multi-tile / multi-split path: block_n=128 -> 3 feat tiles, 2 "parallel" splits, a ragged
    # last tile and one clamped duplicate step (its padded target columns are all -1).
    sw, ww, feat_out = hug_mhe(feat, classifier, target, alpha=1.0, beta=1.0, block_n=128)
    jax.block_until_ready((sw, ww, feat_out))

    sw_ref, ww_ref_val, _ = _reference(feat, classifier, target, alpha=1.0, beta=1.0)
    np.testing.assert_allclose(np.asarray(sw), np.asarray(sw_ref), rtol=1e-4, atol=1e-5)
    np.testing.assert_allclose(np.asarray(ww), np.asarray(ww_ref_val), rtol=1e-4, atol=1e-5)
    np.testing.assert_array_equal(np.asarray(feat_out), np.asarray(feat))

    # Auto (bytes-budgeted) tile size: single resident tile at this N.
    sw2, ww2, _ = hug_mhe(feat, classifier, target, alpha=1.0, beta=1.0)
    jax.block_until_ready((sw2, ww2))
    np.testing.assert_allclose(np.asarray(sw2), np.asarray(sw_ref), rtol=1e-4, atol=1e-5)
    np.testing.assert_allclose(np.asarray(ww2), np.asarray(ww_ref_val), rtol=1e-4, atol=1e-5)

    print("KERNEL_OK")
</pallas_src>

<mosaic_0001>
module attributes {stable_mosaic.version = 11 : i64} {
  func.func @_hug_mhe_kernel(%arg0: i32, %arg1: i32, %arg2: memref<128x32xf32, #tpu.memory_space<vmem>>, %arg3: memref<8x32xf32, #tpu.memory_space<vmem>>, %arg4: memref<1x128xi32, #tpu.memory_space<vmem>>, %arg5: memref<1x2x8xf32, #tpu.memory_space<vmem>>, %arg6: memref<1x1xf32, #tpu.memory_space<smem>>, %arg7: memref<8x32xf32, #tpu.memory_space<vmem>>) attributes {dimension_semantics = [#tpu.dimension_semantics<parallel>, #tpu.dimension_semantics<arbitrary>], iteration_bounds = array<i64: 2, 2>, scalar_prefetch = 0 : i64, scratch_operands = 1 : i64, tpu.core_type = #tpu.core_type<tc>, window_params = [{transform_indices = @transform_0, window_bounds = array<i64: 128, 32>}, {pipeline_mode = #tpu.pipeline_mode<synchronous>, transform_indices = @transform_1, window_bounds = array<i64: 8, 32>}, {transform_indices = @transform_2, window_bounds = array<i64: 1, 128>}, {transform_indices = @transform_3, window_bounds = array<i64: 1, 2, 8>}, {transform_indices = @transform_4, window_bounds = array<i64: 1, 1>}]} {
    %c0_i32 = arith.constant 0 : i32
    %0 = arith.cmpi eq, %arg1, %c0_i32 : i32
    %1 = arith.extui %0 : i1 to i32
    %c0_i32_0 = arith.constant 0 : i32
    %2 = arith.cmpi ne, %1, %c0_i32_0 : i32
    scf.if %2 {
      %cst_22 = arith.constant 0.000000e+00 : f32
      %39 = vector.broadcast %cst_22 : f32 to vector<1x2x8xf32>
      %c0_23 = arith.constant 0 : index
      %c0_24 = arith.constant 0 : index
      %c0_25 = arith.constant 0 : index
      %40 = vector.load %arg5[%c0_23, %c0_24, %c0_25] : memref<1x2x8xf32, #tpu.memory_space<vmem>>, vector<1x2x8xf32>
      tpu.vector_store %arg5[%c0_23, %c0_24, %c0_25], %39 {strides = array<i32>} : memref<1x2x8xf32, #tpu.memory_space<vmem>>, vector<1x2x8xf32>,
      %c0_26 = arith.constant 0 : index
      %c0_27 = arith.constant 0 : index
      %41 = vector.load %arg3[%c0_26, %c0_27] : memref<8x32xf32, #tpu.memory_space<vmem>>, vector<8x32xf32>
      %42 = arith.mulf %41, %41 : vector<8x32xf32>
      %cst_28 = arith.constant dense<0.000000e+00> : vector<8xf32>
      %43 = vector.multi_reduction <add>, %42, %cst_28 [1] : vector<8x32xf32> to vector<8xf32>
      %44 = vector.shape_cast %43 : vector<8xf32> to vector<8x1xf32>
      %cst_29 = arith.constant 1.000000e-30 : f32
      %45 = vector.broadcast %cst_29 : f32 to vector<8x1xf32>
      %46 = arith.maximumf %44, %45 : vector<8x1xf32>
      %47 = math.rsqrt %46 : vector<8x1xf32>
      %48 = vector.broadcast %47 : vector<8x1xf32> to vector<8x32xf32>
      %49 = arith.mulf %41, %48 : vector<8x32xf32>
      %c0_30 = arith.constant 0 : index
      %c0_31 = arith.constant 0 : index
      %50 = vector.load %arg7[%c0_30, %c0_31] : memref<8x32xf32, #tpu.memory_space<vmem>>, vector<8x32xf32>
      tpu.vector_store %arg7[%c0_30, %c0_31], %49 {strides = array<i32>} : memref<8x32xf32, #tpu.memory_space<vmem>>, vector<8x32xf32>,
      %cst_32 = arith.constant dense<0.000000e+00> : vector<8x8xf32>
      %51 = tpu.matmul %49, %49, %cst_32 {dimension_numbers = #tpu.dot_dimension_numbers<[1], [1], [0], [0], [0, 0, 1, 0], [], []>} : vector<8x32xf32>, vector<8x32xf32>, vector<8x8xf32> -> vector<8x8xf32>
      %cst_33 = arith.constant 2.000000e+00 : f32
      %52 = vector.broadcast %cst_33 : f32 to vector<8x8xf32>
      %53 = arith.mulf %52, %51 : vector<8x8xf32>
      %cst_34 = arith.constant 2.000000e+00 : f32
      %54 = vector.broadcast %cst_34 : f32 to vector<8x8xf32>
      %55 = arith.subf %54, %53 : vector<8x8xf32>
      %cst_35 = arith.constant 0.000000e+00 : f32
      %56 = vector.broadcast %cst_35 : f32 to vector<8x8xf32>
      %57 = arith.maximumf %55, %56 : vector<8x8xf32>
      %58 = tpu.iota {dimensions = array<i32: 0>} : vector<8x8xi32>
      %59 = tpu.iota {dimensions = array<i32: 1>} : vector<8x8xi32>
      %60 = arith.cmpi sgt, %59, %58 : vector<8x8xi32>
      %cst_36 = arith.constant 0.000000e+00 : f32
      %61 = vector.broadcast %cst_36 : f32 to vector<8x8xf32>
      %62 = arith.cmpf ogt, %57, %61 : vector<8x8xf32>
      %63 = arith.andi %60, %62 : vector<8x8xi1>
      %cst_37 = arith.constant 1.000000e+00 : f32
      %64 = vector.broadcast %cst_37 : f32 to vector<8x8xf32>
      %65 = arith.select %63, %57, %64 : vector<8x8xi1>, vector<8x8xf32>
      %cst_38 = arith.constant 1.000000e+00 : f32
      %66 = vector.broadcast %cst_38 : f32 to vector<8x8xf32>
      %67 = arith.divf %66, %65 : vector<8x8xf32>
      %cst_39 = arith.constant 0.000000e+00 : f32
      %68 = vector.broadcast %cst_39 : f32 to vector<8x8xf32>
      %69 = arith.select %63, %67, %68 : vector<8x8xi1>, vector<8x8xf32>
      %70 = vector.shape_cast %69 : vector<8x8xf32> to vector<1x8x8xf32>
      %cst_40 = arith.constant dense<0.000000e+00> : vector<1xf32>
      %71 = vector.multi_reduction <add>, %70, %cst_40 [1, 2] : vector<1x8x8xf32> to vector<1xf32>
      %72 = vector.shape_cast %71 : vector<1xf32> to vector<1x1x1xf32>
      %73 = vector.extract %72[0, 0, 0] : f32 from vector<1x1x1xf32>
      %74 = arith.extui %63 : vector<8x8xi1> to vector<8x8xi32>
      %75 = arith.sitofp %74 : vector<8x8xi32> to vector<8x8xf32>
      %76 = vector.shape_cast %75 : vector<8x8xf32> to vector<1x8x8xf32>
      %cst_41 = arith.constant dense<0.000000e+00> : vector<1xf32>
      %77 = vector.multi_reduction <add>, %76, %cst_41 [1, 2] : vector<1x8x8xf32> to vector<1xf32>
      %78 = vector.shape_cast %77 : vector<1xf32> to vector<1x1x1xf32>
      %79 = vector.extract %78[0, 0, 0] : f32 from vector<1x1x1xf32>
      %cst_42 = arith.constant 1.000000e+00 : f32
      %80 = arith.maximumf %79, %cst_42 : f32
      %81 = arith.divf %73, %80 : f32
      %c0_43 = arith.constant 0 : index
      %c0_44 = arith.constant 0 : index
      %82 = memref.load %arg6[%c0_43, %c0_44] : memref<1x1xf32, #tpu.memory_space<smem>>
      memref.store %81, %arg6[%c0_43, %c0_44] : memref<1x1xf32, #tpu.memory_space<smem>>
    } else {
    }
    %c0 = arith.constant 0 : index
    %c0_1 = arith.constant 0 : index
    %3 = vector.load %arg2[%c0, %c0_1] : memref<128x32xf32, #tpu.memory_space<vmem>>, vector<128x32xf32>
    %cst = arith.constant 1.000000e+00 : f32
    %4 = vector.broadcast %cst : f32 to vector<1x32xf32>
    %5 = arith.mulf %3, %3 : vector<128x32xf32>
    %cst_2 = arith.constant dense<0.000000e+00> : vector<1x128xf32>
    %6 = tpu.matmul %4, %5, %cst_2 {dimension_numbers = #tpu.dot_dimension_numbers<[1], [1], [0], [0], [0, 0, 1, 0], [], []>} : vector<1x32xf32>, vector<128x32xf32>, vector<1x128xf32> -> vector<1x128xf32>
    %cst_3 = arith.constant 1.000000e-30 : f32
    %7 = vector.broadcast %cst_3 : f32 to vector<1x128xf32>
    %8 = arith.maximumf %6, %7 : vector<1x128xf32>
    %9 = math.rsqrt %8 : vector<1x128xf32>
    %c0_4 = arith.constant 0 : index
    %c0_5 = arith.constant 0 : index
    %10 = vector.load %arg7[%c0_4, %c0_5] : memref<8x32xf32, #tpu.memory_space<vmem>>, vector<8x32xf32>
    %cst_6 = arith.constant dense<0.000000e+00> : vector<8x128xf32>
    %11 = tpu.matmul %10, %3, %cst_6 {dimension_numbers = #tpu.dot_dimension_numbers<[1], [1], [0], [0], [0, 0, 1, 0], [], []>} : vector<8x32xf32>, vector<128x32xf32>, vector<8x128xf32> -> vector<8x128xf32>
    %12 = vector.broadcast %9 : vector<1x128xf32> to vector<8x128xf32>
    %13 = arith.mulf %11, %12 : vector<8x128xf32>
    %c0_7 = arith.constant 0 : index
    %c0_8 = arith.constant 0 : index
    %14 = vector.load %arg4[%c0_7, %c0_8] : memref<1x128xi32, #tpu.memory_space<vmem>>, vector<1x128xi32>
    %15 = tpu.iota {dimensions = array<i32: 0>} : vector<8x1xi32>
    %16 = vector.broadcast %15 : vector<8x1xi32> to vector<8x128xi32>
    %17 = vector.broadcast %14 : vector<1x128xi32> to vector<8x128xi32>
    %18 = arith.cmpi eq, %16, %17 : vector<8x128xi32>
    %19 = arith.extui %18 : vector<8x128xi1> to vector<8x128xi32>
    %20 = arith.sitofp %19 : vector<8x128xi32> to vector<8x128xf32>
    %cst_9 = arith.constant 0.000000e+00 : f32
    %21 = vector.broadcast %cst_9 : f32 to vector<8x128xf32>
    %22 = arith.select %18, %13, %21 : vector<8x128xi1>, vector<8x128xf32>
    %cst_10 = arith.constant dense<0.000000e+00> : vector<128xf32>
    %23 = vector.multi_reduction <add>, %22, %cst_10 [0] : vector<8x128xf32> to vector<128xf32>
    %24 = vector.shape_cast %23 : vector<128xf32> to vector<1x128xf32>
    %cst_11 = arith.constant 2.000000e+00 : f32
    %25 = vector.broadcast %cst_11 : f32 to vector<1x128xf32>
    %26 = arith.mulf %25, %24 : vector<1x128xf32>
    %cst_12 = arith.constant 2.000000e+00 : f32
    %27 = vector.broadcast %cst_12 : f32 to vector<1x128xf32>
    %28 = arith.subf %27, %26 : vector<1x128xf32>
    %cst_13 = arith.constant 0.000000e+00 : f32
    %29 = vector.broadcast %cst_13 : f32 to vector<1x128xf32>
    %30 = arith.maximumf %28, %29 : vector<1x128xf32>
    %31 = math.sqrt %30 : vector<1x128xf32>
    %cst_14 = arith.constant 1.000000e+00 : f32
    %32 = vector.broadcast %cst_14 : f32 to vector<1x128xf32>
    %33 = tpu.concatenate %31, %32 in 0 : vector<1x128xf32>, vector<1x128xf32> -> vector<2x128xf32>
    %cst_15 = arith.constant dense<0.000000e+00> : vector<2x8xf32>
    %34 = tpu.matmul %33, %20, %cst_15 {dimension_numbers = #tpu.dot_dimension_numbers<[1], [1], [0], [0], [0, 0, 1, 0], [], []>} : vector<2x128xf32>, vector<8x128xf32>, vector<2x8xf32> -> vector<2x8xf32>
    %c0_16 = arith.constant 0 : index
    %c0_17 = arith.constant 0 : index
    %c0_18 = arith.constant 0 : index
    %35 = vector.load %arg5[%c0_16, %c0_17, %c0_18] : memref<1x2x8xf32, #tpu.memory_space<vmem>>, vector<1x2x8xf32>
    %36 = vector.shape_cast %34 : vector<2x8xf32> to vector<1x2x8xf32>
    %37 = arith.addf %35, %36 : vector<1x2x8xf32>
    %c0_19 = arith.constant 0 : index
    %c0_20 = arith.constant 0 : index
    %c0_21 = arith.constant 0 : index
    %38 = vector.load %arg5[%c0_19, %c0_20, %c0_21] : memref<1x2x8xf32, #tpu.memory_space<vmem>>, vector<1x2x8xf32>
    tpu.vector_store %arg5[%c0_19, %c0_20, %c0_21], %37 {strides = array<i32>} : memref<1x2x8xf32, #tpu.memory_space<vmem>>, vector<1x2x8xf32>,
    return
  }
  func.func @transform_0(%arg0: i32, %arg1: i32) -> (i32, i32) {
    %c2_i32 = arith.constant 2 : i32
    %0 = arith.muli %arg0, %c2_i32 : i32
    %1 = arith.addi %0, %arg1 : i32
    %c2_i32_0 = arith.constant 2 : i32
    %2 = arith.minsi %1, %c2_i32_0 : i32
    %c0_i32 = arith.constant 0 : i32
    %c0_i32_1 = arith.constant 0 : i32
    return %2, %c0_i32 : i32, i32
  }
  func.func @transform_1(%arg0: i32, %arg1: i32) -> (i32, i32) {
    %c0_i32 = arith.constant 0 : i32
    %c0_i32_0 = arith.constant 0 : i32
    %c0_i32_1 = arith.constant 0 : i32
    return %c0_i32, %c0_i32_0 : i32, i32
  }
  func.func @transform_2(%arg0: i32, %arg1: i32) -> (i32, i32) {
    %c2_i32 = arith.constant 2 : i32
    %0 = arith.muli %arg0, %c2_i32 : i32
    %1 = arith.addi %0, %arg1 : i32
    %c0_i32 = arith.constant 0 : i32
    %c0_i32_0 = arith.constant 0 : i32
    return %c0_i32, %1 : i32, i32
  }
  func.func @transform_3(%arg0: i32, %arg1: i32) -> (i32, i32, i32) {
    %c0_i32 = arith.constant 0 : i32
    %c0_i32_0 = arith.constant 0 : i32
    %c0_i32_1 = arith.constant 0 : i32
    return %arg0, %c0_i32, %c0_i32_0 : i32, i32, i32
  }
  func.func @transform_4(%arg0: i32, %arg1: i32) -> (i32, i32) {
    %c0_i32 = arith.constant 0 : i32
    %c0_i32_0 = arith.constant 0 : i32
    %c0_i32_1 = arith.constant 0 : i32
    return %c0_i32, %c0_i32_0 : i32, i32
  }
}

</mosaic_0001>

<llo_original>
// kernel: tpu_custom_call.1
$region0: #{tpu_custom_call.1}
  #allocation0 [shape = 'u32[]', space=smem, size = 0x4, offset = 0x4, fixed_abs, tag = 'smem constant byte address 0x4 - core index']
  #allocation1 [shape = 'u32[144,128]{1,0:T(1,128)}', space=vmem, size = 0x12000, scoped, tag = 'internal scratch']
  #allocation2 [shape = 'f32[8,32]{1,0:T(8,128)}', space=vmem, size = 0x1000, scoped, tag = 'scratch operand']
  %s0 = inlined_call_operand.hbm [shape: f32[320,32], index: 0, kind: input, shape index: {}]
  %s1 = inlined_call_operand.hbm [shape: f32[8,32], index: 1, kind: input, shape index: {}]
  %s2 = inlined_call_operand.hbm [shape: s32[1,512], index: 2, kind: input, shape index: {}]
  %s3 = inlined_call_operand.hbm [shape: f32[2,2,8], index: 3, kind: output, shape index: {0}]
  %s4 = inlined_call_operand.hbm [shape: f32[1,1], index: 4, kind: output, shape index: {1}]
  %5 = xla_tuple %s3, %s4
  %s6 = sld [smem:[#allocation0]]
  $region69: #{tpu_custom_call.1} parent=0
    _
  %s8 = ssub.s32 1, %s6
  %s9 = scalar_select 0, %s8, %s6
  $region1: #{tpu_custom_call.1} parent=0
    #allocation3 [shape = 'u8[131072]{0}', space=vmem, size = 0x20000, scoped, tag = 'input window, operand 0']
    #allocation4 [shape = 's32[2]{0}', space=sflag, size = 0x8, scoped, tag = 'scoped memory for tpu_custom_call.1']
    #allocation5 [shape = 's32[2]{0}', space=sflag, size = 0x8, scoped, tag = 'scoped memory for tpu_custom_call.1']
    #allocation6 [shape = 's32[2]{0}', space=sflag, size = 0x8, scoped, tag = 'scoped memory for tpu_custom_call.1']
    #allocation7 [shape = 'u8[4096]{0}', space=vmem, size = 0x1000, scoped, tag = 'input window, operand 1, single buffered']
    #allocation8 [shape = 's32[1]{0}', space=sflag, size = 0x4, scoped, tag = 'scoped memory for tpu_custom_call.1']
    #allocation9 [shape = 'u8[1024]{0}', space=vmem, size = 0x400, scoped, tag = 'input window, operand 2']
    #allocation10 [shape = 'u8[2048]{0}', space=vmem, size = 0x800, scoped, tag = 'output window, operand 0']
    #allocation11 [shape = 'u8[512]{0}', space=smem, size = 0x200, scoped, tag = 'output window, operand 1, single buffered']
    %10 = vsyncpa [#allocation4], 0
    %s11 = scalar_lea.sflag [#allocation4], 1
    %12 = vsyncpa %s11, 0
    %13 = vsyncpa [#allocation8], 0
    %14 = vsyncpa [#allocation5], 0
    %s15 = scalar_lea.sflag [#allocation5], 1
    %16 = vsyncpa %s15, 0
    %17 = vsyncpa [#allocation6], 0
    loop: start=0, step=1, limit=6
    $region2: #{tpu_custom_call.1} parent=1 // loop_pre_header
      _
    $region3: #{tpu_custom_call.1} parent=1 // loop_header
      %s19 = sphi 0, %s23
      %p20 = scmp.ge.s32.totalorder %s19, 6
      %s26 = sphi 0, %s38
      %s27 = sphi 0, %s34
      %s28 = sphi 0, %s26
      %s29 = sphi 0, %s27
      %s30 = sphi 0, %s28
      %s31 = sphi 0, %s29
      %s49 = sphi 0, %s51
      %s52 = sphi 0, %s49
      %s53 = sphi 0, %s52
      %s69 = sphi 0, %s53
      %s73 = sphi 0, %s73
      %s75 = sphi 0, %s73
      %s76 = sphi 0, %s75
      %s90 = sphi 0, %s76
      %s100 = sphi 0, %s102
      %s103 = sphi 0, %s100
      %s104 = sphi 0, %s103
      %s120 = sphi 0, %s104
      %s126 = sphi 0, %s128
      %s129 = sphi 0, %s126
      %s130 = sphi 0, %s129
      %s146 = sphi 0, %s130
      %s150 = sphi 0, %s150
      %s152 = sphi 0, %s150
      %s153 = sphi 0, %s152
      %s167 = sphi 0, %s153
    $region4: #{tpu_custom_call.1} parent=1 // loop_header_branch
      %22 = sbr.rel (%p20) target = $region8
    $region5: #{tpu_custom_call.1} parent=1 // loop_body
      %s24 = ssub.s32 %s19, 1
      %s25 = ssub.s32 %s19, 2
      %s32 = sadd.s32 1, %s27
      %p33 = scmp.ge.s32.totalorder %s32, 2
      %s34 = scalar_select %p33, 0, %s32
      %s35 = sadd.s32 1, %s26
      %s36 = scalar_select %p33, %s35, %s26
      %p37 = scmp.ge.s32.totalorder %s36, 2
      %s38 = scalar_select %p37, 0, %s36
      %s39 = smul.u32 %s26, 2
      %s40 = sadd.s32 %s39, %s27
      %p41 = scmp.lt.s32.totalorder %s40, 2
      %s42 = scalar_select %p41, %s40, 2
      %s43 = smul.u32 %s38, 2
      %s44 = sadd.s32 %s43, %s34
      %p45 = scmp.lt.s32.totalorder %s44, 2
      %s46 = scalar_select %p45, %s44, 2
      %s47 = ssub.s32 %s42, %s46
      %p48 = scmp.eq.s32.totalorder %s47, 0
      %s50 = sadd.s32 %s49, 1
      %s51 = scalar_select %p48, %s49, %s50
      %p54 = pneg %p48
      %p55 = scmp.eq.s32.totalorder %s19, 3
      %p56 = por %p54, %p55
      %p57 = scmp.ne.s32.totalorder %s49, %s52
      %p58 = scmp.eq.s32.totalorder %s19, 0
      %p59 = por %p57, %p58
      %p60 = scmp.ne.s32.totalorder %s49, %s52
      %p61 = scmp.eq.s32.totalorder %s24, 3
      %p62 = por %p60, %p61
      %p63 = scmp.ne.s32.totalorder %s52, %s53
      %p64 = scmp.eq.s32.totalorder %s24, 0
      %p65 = por %p63, %p64
      %p66 = scmp.ne.s32.totalorder %s52, %s53
      %p67 = scmp.eq.s32.totalorder %s25, 3
      %p68 = por %p66, %p67
      %p70 = scmp.ne.s32.totalorder %s53, %s69
      %p71 = scmp.eq.s32.totalorder %s25, 0
      %p72 = por %p70, %p71
      %s74 = sadd.s32 %s73, 1
      %p77 = scmp.eq.s32.totalorder %s19, 3
      %p78 = scmp.ne.s32.totalorder %s73, %s75
      %p79 = scmp.eq.s32.totalorder %s19, 0
      %p80 = por %p78, %p79
      %p81 = scmp.ne.s32.totalorder %s73, %s75
      %p82 = scmp.eq.s32.totalorder %s24, 3
      %p83 = por %p81, %p82
      %p84 = scmp.ne.s32.totalorder %s75, %s76
      %p85 = scmp.eq.s32.totalorder %s24, 0
      %p86 = por %p84, %p85
      %p87 = scmp.ne.s32.totalorder %s75, %s76
      %p88 = scmp.eq.s32.totalorder %s25, 3
      %p89 = por %p87, %p88
      %p91 = scmp.ne.s32.totalorder %s76, %s90
      %p92 = scmp.eq.s32.totalorder %s25, 0
      %p93 = por %p91, %p92
      %s94 = smul.u32 %s26, 2
      %s95 = sadd.s32 %s94, %s27
      %s96 = smul.u32 %s38, 2
      %s97 = sadd.s32 %s96, %s34
      %s98 = ssub.s32 %s95, %s97
      %p99 = scmp.eq.s32.totalorder %s98, 0
      %s101 = sadd.s32 %s100, 1
      %s102 = scalar_select %p99, %s100, %s101
      %p105 = pneg %p99
      %p106 = scmp.eq.s32.totalorder %s19, 3
      %p107 = por %p105, %p106
      %p108 = scmp.ne.s32.totalorder %s100, %s103
      %p109 = scmp.eq.s32.totalorder %s19, 0
      %p110 = por %p108, %p109
      %p111 = scmp.ne.s32.totalorder %s100, %s103
      %p112 = scmp.eq.s32.totalorder %s24, 3
      %p113 = por %p111, %p112
      %p114 = scmp.ne.s32.totalorder %s103, %s104
      %p115 = scmp.eq.s32.totalorder %s24, 0
      %p116 = por %p114, %p115
      %p117 = scmp.ne.s32.totalorder %s103, %s104
      %p118 = scmp.eq.s32.totalorder %s25, 3
      %p119 = por %p117, %p118
      %p121 = scmp.ne.s32.totalorder %s104, %s120
      %p122 = scmp.eq.s32.totalorder %s25, 0
      %p123 = por %p121, %p122
      %s124 = ssub.s32 %s26, %s38
      %p125 = scmp.eq.s32.totalorder %s124, 0
      %s127 = sadd.s32 %s126, 1
      %s128 = scalar_select %p125, %s126, %s127
      %p131 = pneg %p125
      %p132 = scmp.eq.s32.totalorder %s19, 3
      %p133 = por %p131, %p132
      %p134 = scmp.ne.s32.totalorder %s126, %s129
      %p135 = scmp.eq.s32.totalorder %s19, 0
      %p136 = por %p134, %p135
      %p137 = scmp.ne.s32.totalorder %s126, %s129
      %p138 = scmp.eq.s32.totalorder %s24, 3
      %p139 = por %p137, %p138
      %p140 = scmp.ne.s32.totalorder %s129, %s130
      %p141 = scmp.eq.s32.totalorder %s24, 0
      %p142 = por %p140, %p141
      %p143 = scmp.ne.s32.totalorder %s129, %s130
      %p144 = scmp.eq.s32.totalorder %s25, 3
      %p145 = por %p143, %p144
      %p147 = scmp.ne.s32.totalorder %s130, %s146
      %p148 = scmp.eq.s32.totalorder %s25, 0
      %p149 = por %p147, %p148
      %s151 = sadd.s32 %s150, 1
      %p154 = scmp.eq.s32.totalorder %s19, 3
      %p155 = scmp.ne.s32.totalorder %s150, %s152
      %p156 = scmp.eq.s32.totalorder %s19, 0
      %p157 = por %p155, %p156
      %p158 = scmp.ne.s32.totalorder %s150, %s152
      %p159 = scmp.eq.s32.totalorder %s24, 3
      %p160 = por %p158, %p159
      %p161 = scmp.ne.s32.totalorder %s152, %s153
      %p162 = scmp.eq.s32.totalorder %s24, 0
      %p163 = por %p161, %p162
      %p164 = scmp.ne.s32.totalorder %s152, %s153
      %p165 = scmp.eq.s32.totalorder %s25, 3
      %p166 = por %p164, %p165
      %p168 = scmp.ne.s32.totalorder %s153, %s167
      %p169 = scmp.eq.s32.totalorder %s25, 0
      %p170 = por %p168, %p169
      %p171 = scmp.le.s32.totalorder 1, %s19
      %p172 = scmp.lt.s32.totalorder %s19, 5
      %p173 = pnand %p171, %p172
      %p174 = pneg %p173
      // Predicated region
      $region9: #{tpu_custom_call.1} parent=5 // pred_check
        _
      $region10: #{tpu_custom_call.1} parent=5 // pred_check_branch
        %176 = sbr.rel (%p173) target = $region12
      $region11: #{tpu_custom_call.1} parent=5 // pred_region
        %s177 = ssub.s32 %s19, 1
        // Predicated region
        $region13: #{tpu_custom_call.1} parent=11 // pred_check
          %p178 = pneg %p86
        $region14: #{tpu_custom_call.1} parent=11 // pred_check_branch
          %180 = sbr.rel (%p178) target = $region16
        $region15: #{tpu_custom_call.1} parent=11 // pred_region
          %s182 = ssub.s32 128, 128
          %183 = vsyncadd [#allocation8], %s182
          %s185 = sshll.u32 [#allocation7], 4
          %s186 = int_to_ptr.vmem [resolvable:$true] %s185
          %188 = dma.hbm_to_vmem [thread:$0]  %s1, 128, %s186, [#allocation8]
        $region16: #{tpu_custom_call.1} parent=11 // pred_fallthru
          _
      $region12: #{tpu_custom_call.1} parent=5 // pred_fallthru
        _
      %p189 = scmp.lt.s32.totalorder %s19, 4
      // Predicated region
      $region17: #{tpu_custom_call.1} parent=5 // pred_check
        %p190 = pneg %p189
      $region18: #{tpu_custom_call.1} parent=5 // pred_check_branch
        %192 = sbr.rel (%p190) target = $region20
      $region19: #{tpu_custom_call.1} parent=5 // pred_region
        // Predicated region
        $region21: #{tpu_custom_call.1} parent=19 // pred_check
          %p193 = pneg %p59
        $region22: #{tpu_custom_call.1} parent=19 // pred_check_branch
          %195 = sbr.rel (%p193) target = $region24
        $region23: #{tpu_custom_call.1} parent=19 // pred_region
          %s196 = sand.u32 %s19, 1
          %s197 = scalar_lea.sflag [#allocation4], %s196
          %s198 = sand.u32 %s49, 1
          %s199 = smul.addr %s198, 128
          %s200 = scalar_lea.vmem [#allocation3], %s199
          %s201 = smul.u32 %s26, 2
          %s202 = sadd.s32 %s201, %s27
          %p203 = scmp.lt.s32.totalorder %s202, 2
          %s204 = scalar_select %p203, %s202, 2
          %s205 = smul.u32 16, %s204
          %s206 = ssub.s32 40, %s205
          %p207 = scmp.lt.s32.totalorder %s206, 16
          %s208 = scalar_select %p207, %s206, 16
          %s209 = smul.u32 128, %s208
          %s211 = ssub.s32 2048, %s209
          %212 = vsyncadd %s197, %s211
          %p213 = scmp.ne.s32.totalorder 0, %s209
          %s214 = smul.addr %s205, 128
          %s215 = scalar_lea.hbm %s0, %s214
          %s216 = smul.u32 8, %s208
          %s217 = sshll.u32 %s200, 4
          %s218 = int_to_ptr.vmem [resolvable:$true] %s217
          %s219 = sshll.u32 %s216, 4
          %223 = dma.hbm_to_vmem [thread:$0]  (%p213), %s215, %s219, %s218, %s197, 128, 128, 8
        $region24: #{tpu_custom_call.1} parent=19 // pred_fallthru
          _
        // Predicated region
        $region25: #{tpu_custom_call.1} parent=19 // pred_check
          %p224 = pneg %p110
        $region26: #{tpu_custom_call.1} parent=19 // pred_check_branch
          %226 = sbr.rel (%p224) target = $region28
        $region27: #{tpu_custom_call.1} parent=19 // pred_region
          %s227 = sand.u32 %s19, 1
          %s228 = scalar_lea.sflag [#allocation4], %s227
          %s229 = sand.u32 %s100, 1
          %s230 = scalar_lea.vmem [#allocation9], %s229
          %s231 = smul.u32 %s26, 2
          %s232 = sadd.s32 %s231, %s27
          %s234 = ssub.s32 16, 16
          %235 = vsyncadd %s228, %s234
          %s236 = smul.addr %s232, 16
          %s237 = scalar_lea.hbm %s2, %s236
          %s239 = sshll.u32 %s230, 4
          %s240 = int_to_ptr.vmem [resolvable:$true] %s239
          %242 = dma.hbm_to_vmem [thread:$0]  %s237, 16, %s240, %s228
        $region28: #{tpu_custom_call.1} parent=19 // pred_fallthru
          _
      $region20: #{tpu_custom_call.1} parent=5 // pred_fallthru
        _
      %p243 = scmp.le.s32.totalorder 1, %s19
      %p244 = scmp.lt.s32.totalorder %s19, 5
      %p245 = pnand %p243, %p244
      %p246 = pneg %p245
      // Predicated region
      $region29: #{tpu_custom_call.1} parent=5 // pred_check
        _
      $region30: #{tpu_custom_call.1} parent=5 // pred_check_branch
        %248 = sbr.rel (%p245) target = $region32
      $region31: #{tpu_custom_call.1} parent=5 // pred_region
        %s249 = ssub.s32 %s19, 1
        %s250 = sand.u32 %s24, 1
        %s251 = scalar_lea.sflag [#allocation4], %s250
        %s252 = sand.u32 %s52, 1
        %s253 = smul.addr %s252, 128
        %s254 = scalar_lea.vmem [#allocation3], %s253
        // Predicated region
        $region33: #{tpu_custom_call.1} parent=31 // pred_check
          %p255 = pneg %p65
        $region34: #{tpu_custom_call.1} parent=31 // pred_check_branch
          %257 = sbr.rel (%p255) target = $region36
        $region35: #{tpu_custom_call.1} parent=31 // pred_region
          %258 = dma.done %s251, 2048
        $region36: #{tpu_custom_call.1} parent=31 // pred_fallthru
          _
        // Predicated region
        $region37: #{tpu_custom_call.1} parent=31 // pred_check
          %p259 = pneg %p86
        $region38: #{tpu_custom_call.1} parent=31 // pred_check_branch
          %261 = sbr.rel (%p259) target = $region40
        $region39: #{tpu_custom_call.1} parent=31 // pred_region
          %262 = dma.done [#allocation8], 128
        $region40: #{tpu_custom_call.1} parent=31 // pred_fallthru
          _
        %s263 = sand.u32 %s24, 1
        %s264 = scalar_lea.sflag [#allocation4], %s263
        %s265 = sand.u32 %s103, 1
        %s266 = scalar_lea.vmem [#allocation9], %s265
        // Predicated region
        $region41: #{tpu_custom_call.1} parent=31 // pred_check
          %p267 = pneg %p116
        $region42: #{tpu_custom_call.1} parent=31 // pred_check_branch
          %269 = sbr.rel (%p267) target = $region44
        $region43: #{tpu_custom_call.1} parent=31 // pred_region
          %270 = dma.done %s264, 16
        $region44: #{tpu_custom_call.1} parent=31 // pred_fallthru
          _
        %s271 = sand.u32 %s24, 1
        %s272 = scalar_lea.sflag [#allocation4], %s271
        %s273 = sand.u32 %s52, 1
        %s274 = smul.addr %s273, 128
        %s275 = scalar_lea.vmem [#allocation3], %s274
        %p276 = pneg %p65
        %p277 = pneg %p62
        %p278 = pneg %p86
        %p279 = pneg %p83
        %s280 = sand.u32 %s24, 1
        %s281 = scalar_lea.sflag [#allocation4], %s280
        %s282 = sand.u32 %s103, 1
        %s283 = scalar_lea.vmem [#allocation9], %s282
        %p284 = pneg %p116
        %p285 = pneg %p113
        %p286 = pneg %p142
        %p287 = pneg %p139
        %s288 = sand.u32 %s129, 1
        %s289 = scalar_lea.sflag [#allocation5], %s288
        %s290 = sand.u32 %s129, 1
        %s291 = smul.addr %s290, 2
        %s292 = scalar_lea.vmem [#allocation10], %s291
        %p293 = pneg %p163
        %p294 = pneg %p160
        %s295 = smul.u32 %s28, 2
        %s296 = sadd.s32 %s295, %s29
        %p297 = scmp.lt.s32.totalorder %s296, 2
        %s298 = scalar_select %p297, %s296, 2
        %s299 = smul.u32 16, %s298
        %s300 = ssub.s32 40, %s299
        %p301 = scmp.lt.s32.totalorder %s300, 16
        %s302 = scalar_select %p301, %s300, 16
        %s303 = smul.u32 128, %s302
        %s304 = smul.u32 %s28, 2
        %s305 = sadd.s32 %s304, %s29
        %p306 = scmp.eq.s32.totalorder %s29, 0
        // Predicated region
        $region45: #{tpu_custom_call.1} parent=31 // pred_check
          %p307 = pneg %p306
        $region46: #{tpu_custom_call.1} parent=31 // pred_check_branch
          %309 = sbr.rel (%p307) target = $region48
        $region47: #{tpu_custom_call.1} parent=31 // pred_region
          %vm310 = vcmask 58368
          %311 = vst.msk [vmem:[%s292] sm:$0x3] %vm310, 0.0
          %v312 = vld [vmem:[#allocation7] sm:$0xff]
          %v313 = vmul.f32 %v312, %v312
          %vm314 = vcmask 261120
          %v315 = vsel %vm314, %v313, 0.0
          %316 = vadd.xlane.f32.xlu0 %v315
          %v317 = vpop.xlane.xlu0 %316
          %v318 = vmax.f32 %v317, 1e-30
          %v319 = vrsqrt.pop %v318
          %v320 = vmul.f32 %v312, %v319
          %321 = vst.msk [vmem:[#allocation2] sm:$0xff] %vm314, %v320
          %v323 = vsel %vm314, %v320, 0
          %325 = vmatprep.subr.mxu0 0.0
          %326 = vmatpush1.xpose.msra.mxu0 %v323
          %327 = vmatprep.subr.mxu0 0.0
          %328 = vmatpush1.xpose.msra.mxu0 0.0
          %329 = vmatprep.subr.mxu0 0.0
          %330 = vmatpush1.xpose.msra.mxu0 0.0
          %331 = vmatprep.subr.mxu0 0.0
          %332 = vmatpush1.xpose.msra.mxu0 0.0
          %333 = vmatprep.subr.mxu0 0.0
          %334 = vmatpush1.xpose.msra.mxu0 0.0
          %335 = vmatprep.subr.mxu0 0.0
          %336 = vmatpush1.xpose.msra.mxu0 0.0
          %337 = vmatprep.subr.mxu0 0.0
          %338 = vmatpush1.xpose.msra.mxu0 0.0
          %339 = vmatprep.subr.mxu0 0.0
          %340 = vmatpush1.xpose.msra.mxu0 0.0
          %341 = vmatprep.subr.mxu0 0.0
          %342 = vmatpush1.xpose.msra.mxu0 0.0
          %343 = vmatprep.subr.mxu0 0.0
          %344 = vmatpush1.xpose.msra.mxu0 0.0
          %345 = vmatprep.subr.mxu0 0.0
          %346 = vmatpush1.xpose.msra.mxu0 0.0
          %347 = vmatprep.subr.mxu0 0.0
          %348 = vmatpush1.xpose.msra.mxu0 0.0
          %349 = vmatprep.subr.mxu0 0.0
          %350 = vmatpush1.xpose.msra.mxu0 0.0
          %351 = vmatprep.subr.mxu0 0.0
          %352 = vmatpush1.xpose.msra.mxu0 0.0
          %353 = vmatprep.subr.mxu0 0.0
          %354 = vmatpush1.xpose.msra.mxu0 0.0
          %355 = vmatprep.subr.mxu0 0.0
          %356 = vmatpush1.xpose.msra.mxu0 0.0
          %357 = vmatprep.subr.mxu0 0.0
          %358 = vmatpush1.xpose.msra.mxu0 0.0
          %359 = vmatprep.subr.mxu0 0.0
          %360 = vmatpush1.xpose.msra.mxu0 0.0
          %361 = vmatprep.subr.mxu0 0.0
          %362 = vmatpush1.xpose.msra.mxu0 0.0
          %363 = vmatprep.subr.mxu0 0.0
          %364 = vmatpush1.xpose.msra.mxu0 0.0
          %365 = vmatprep.subr.mxu0 0.0
          %366 = vmatpush1.xpose.msra.mxu0 0.0
          %367 = vmatprep.subr.mxu0 0.0
          %368 = vmatpush1.xpose.msra.mxu0 0.0
          %369 = vmatprep.subr.mxu0 0.0
          %370 = vmatpush1.xpose.msra.mxu0 0.0
          %371 = vmatprep.subr.mxu0 0.0
          %372 = vmatpush1.xpose.msra.mxu0 0.0
          %373 = vmatprep.subr.mxu0 0.0
          %374 = vmatpush1.xpose.msra.mxu0 0.0
          %375 = vmatprep.subr.mxu0 0.0
          %376 = vmatpush1.xpose.msra.mxu0 0.0
          %377 = vmatprep.subr.mxu0 0.0
          %378 = vmatpush1.xpose.msra.mxu0 0.0
          %379 = vmatprep.subr.mxu0 0.0
          %380 = vmatpush1.xpose.msra.mxu0 0.0
          %381 = vmatprep.subr.mxu0 0.0
          %382 = vmatpush1.xpose.msra.mxu0 0.0
          %383 = vmatprep.subr.mxu0 0.0
          %384 = vmatpush1.xpose.msra.mxu0 0.0
          %385 = vmatprep.subr.mxu0 0.0
          %386 = vmatpush1.xpose.msra.mxu0 0.0
          %387 = vmatprep.subr.mxu0 0.0
          %388 = vmatpush1.xpose.msra.mxu0 0.0
          %389 = vmatprep.mubr.f32.mxu0 0.0
          %390 = vmatmul.mubr.f32.gmra.mrb[0].mxu0 %v323
          %v391 = vpop.f32.mrb[0].mxu0
          %v392 = vadd.f32 0.0, %v391
          %v393 = vpop.f32.mrb[0].mxu0
          %394 = vdwg.mxu0
          %v395 = vmul.f32 %v392, 2.0
          %v396 = vsub.f32 2.0, %v395
          %v397 = vmax.f32 %v396, 0.0
          %v398 = vlaneseq
          %v399 = vshrl.u32 %v398, 7
          %v400 = vlaneseq
          %v401 = vand.u32 %v400, 127
          %vm402 = vcmp.gt.s32.totalorder %v401, %v399
          %vm403 = vcmp.gt.f32.partialorder %v397, 0.0
          %vm404 = vmand %vm402, %vm403
          %v405 = vsel %vm404, %v397, 1.0
          %v406 = vrcp.pop %v405
          %v407 = vmul.f32 1.0, %v406
          %v408 = vsel %vm404, %v407, 0.0
          %vm409 = vcmask 64512
          %v410 = vsel %vm409, %v408, 0.0
          %411 = vadd.xlane.f32.xlu0 %v410
          %v412 = vpop.xlane.xlu0 %411
          %v413 = vrot.slane %v412, 4
          %v414 = vadd.f32 %v412, %v413
          %v415 = vrot.slane %v414, 2
          %v416 = vadd.f32 %v414, %v415
          %v417 = vrot.slane %v416, 1
          %v418 = vadd.f32 %v416, %v417
          %s419 = vtos %v418
          %v420 = vsel %vm404, 1, 0
          %v421 = vcvt.s32.f32 %v420
          %v422 = vsel %vm409, %v421, 0.0
          %423 = vadd.xlane.f32.xlu0 %v422
          %v424 = vpop.xlane.xlu0 %423
          %v425 = vrot.slane %v424, 4
          %v426 = vadd.f32 %v424, %v425
          %v427 = vrot.slane %v426, 2
          %v428 = vadd.f32 %v426, %v427
          %v429 = vrot.slane %v428, 1
          %v430 = vadd.f32 %v428, %v429
          %s431 = vtos %v430
          %s432 = smax.f32 %s431, 1.0
          %v433 = vstv %s432
          %v434 = vrcp.pop %v433
          %s435 = vtos %v434
          %s436 = smul.f32 %s419, %s435
          %s437 = scalar_lea.smem [#allocation11], 0
          %438 = sst [smem:[%s437]] %s436
        $region48: #{tpu_custom_call.1} parent=31 // pred_fallthru
          _
        %v439 = vld [vmem:[%s254] sm:$0xff]
        %v440 = vld [vmem:[%s254 + $0x8] sm:$0xff]
        %v441 = vld [vmem:[%s254 + $0x10] sm:$0xff]
        %v442 = vld [vmem:[%s254 + $0x18] sm:$0xff]
        %v443 = vld [vmem:[%s254 + $0x20] sm:$0xff]
        %v444 = vld [vmem:[%s254 + $0x28] sm:$0xff]
        %v445 = vld [vmem:[%s254 + $0x30] sm:$0xff]
        %v446 = vld [vmem:[%s254 + $0x38] sm:$0xff]
        %v447 = vld [vmem:[%s254 + $0x40] sm:$0xff]
        %v448 = vld [vmem:[%s254 + $0x48] sm:$0xff]
        %v449 = vld [vmem:[%s254 + $0x50] sm:$0xff]
        %v450 = vld [vmem:[%s254 + $0x58] sm:$0xff]
        %v451 = vld [vmem:[%s254 + $0x60] sm:$0xff]
        %v452 = vld [vmem:[%s254 + $0x68] sm:$0xff]
        %v453 = vld [vmem:[%s254 + $0x70] sm:$0xff]
        %v454 = vld [vmem:[%s254 + $0x78] sm:$0xff]
        %v455 = vmul.f32 %v439, %v439
        %v456 = vmul.f32 %v440, %v440
        %v457 = vmul.f32 %v441, %v441
        %v458 = vmul.f32 %v442, %v442
        %v459 = vmul.f32 %v443, %v443
        %v460 = vmul.f32 %v444, %v444
        %v461 = vmul.f32 %v445, %v445
        %v462 = vmul.f32 %v446, %v446
        %v463 = vmul.f32 %v447, %v447
        %v464 = vmul.f32 %v448, %v448
        %v465 = vmul.f32 %v449, %v449
        %v466 = vmul.f32 %v450, %v450
        %v467 = vmul.f32 %v451, %v451
        %v468 = vmul.f32 %v452, %v452
        %v469 = vmul.f32 %v453, %v453
        %v470 = vmul.f32 %v454, %v454
        %vm471 = vcmask 261120
        %v473 = vsel %vm471, 1.0, 0
        %v476 = vsel %vm471, %v455, 0
        %v479 = vsel %vm471, %v456, 0
        %v482 = vsel %vm471, %v457, 0
        %v485 = vsel %vm471, %v458, 0
        %v488 = vsel %vm471, %v459, 0
        %v491 = vsel %vm471, %v460, 0
        %v494 = vsel %vm471, %v461, 0
        %v497 = vsel %vm471, %v462, 0
        %v500 = vsel %vm471, %v463, 0
        %v503 = vsel %vm471, %v464, 0
        %v506 = vsel %vm471, %v465, 0
        %v509 = vsel %vm471, %v466, 0
        %v512 = vsel %vm471, %v467, 0
        %v515 = vsel %vm471, %v468, 0
        %v518 = vsel %vm471, %v469, 0
        %v521 = vsel %vm471, %v470, 0
        %523 = vmatprep.subr.mxu0 0.0
        %524 = vmatpush1.xpose.msra.mxu0 %v476
        %525 = vmatprep.subr.mxu0 0.0
        %526 = vmatpush1.xpose.msra.mxu0 %v479
        %527 = vmatprep.subr.mxu0 0.0
        %528 = vmatpush1.xpose.msra.mxu0 %v482
        %529 = vmatprep.subr.mxu0 0.0
        %530 = vmatpush1.xpose.msra.mxu0 %v485
        %531 = vmatprep.subr.mxu0 0.0
        %532 = vmatpush1.xpose.msra.mxu0 %v488
        %533 = vmatprep.subr.mxu0 0.0
        %534 = vmatpush1.xpose.msra.mxu0 %v491
        %535 = vmatprep.subr.mxu0 0.0
        %536 = vmatpush1.xpose.msra.mxu0 %v494
        %537 = vmatprep.subr.mxu0 0.0
        %538 = vmatpush1.xpose.msra.mxu0 %v497
        %539 = vmatprep.subr.mxu0 0.0
        %540 = vmatpush1.xpose.msra.mxu0 %v500
        %541 = vmatprep.subr.mxu0 0.0
        %542 = vmatpush1.xpose.msra.mxu0 %v503
        %543 = vmatprep.subr.mxu0 0.0
        %544 = vmatpush1.xpose.msra.mxu0 %v506
        %545 = vmatprep.subr.mxu0 0.0
        %546 = vmatpush1.xpose.msra.mxu0 %v509
        %547 = vmatprep.subr.mxu0 0.0
        %548 = vmatpush1.xpose.msra.mxu0 %v512
        %549 = vmatprep.subr.mxu0 0.0
        %550 = vmatpush1.xpose.msra.mxu0 %v515
        %551 = vmatprep.subr.mxu0 0.0
        %552 = vmatpush1.xpose.msra.mxu0 %v518
        %553 = vmatprep.subr.mxu0 0.0
        %554 = vmatpush1.xpose.msra.mxu0 %v521
        %555 = vmatprep.subr.mxu0 0.0
        %556 = vmatpush1.xpose.msra.mxu0 0.0
        %557 = vmatprep.subr.mxu0 0.0
        %558 = vmatpush1.xpose.msra.mxu0 0.0
        %559 = vmatprep.subr.mxu0 0.0
        %560 = vmatpush1.xpose.msra.mxu0 0.0
        %561 = vmatprep.subr.mxu0 0.0
        %562 = vmatpush1.xpose.msra.mxu0 0.0
        %563 = vmatprep.subr.mxu0 0.0
        %564 = vmatpush1.xpose.msra.mxu0 0.0
        %565 = vmatprep.subr.mxu0 0.0
        %566 = vmatpush1.xpose.msra.mxu0 0.0
        %567 = vmatprep.subr.mxu0 0.0
        %568 = vmatpush1.xpose.msra.mxu0 0.0
        %569 = vmatprep.subr.mxu0 0.0
        %570 = vmatpush1.xpose.msra.mxu0 0.0
        %571 = vmatprep.subr.mxu0 0.0
        %572 = vmatpush1.xpose.msra.mxu0 0.0
        %573 = vmatprep.subr.mxu0 0.0
        %574 = vmatpush1.xpose.msra.mxu0 0.0
        %575 = vmatprep.subr.mxu0 0.0
        %576 = vmatpush1.xpose.msra.mxu0 0.0
        %577 = vmatprep.subr.mxu0 0.0
        %578 = vmatpush1.xpose.msra.mxu0 0.0
        %579 = vmatprep.subr.mxu0 0.0
        %580 = vmatpush1.xpose.msra.mxu0 0.0
        %581 = vmatprep.subr.mxu0 0.0
        %582 = vmatpush1.xpose.msra.mxu0 0.0
        %583 = vmatprep.subr.mxu0 0.0
        %584 = vmatpush1.xpose.msra.mxu0 0.0
        %585 = vmatprep.subr.mxu0 0.0
        %586 = vmatpush1.xpose.msra.mxu0 0.0
        %587 = vmatprep.mubr.f32.mxu0 0.0
        %588 = vmatmul.mubr.f32.gmra.mrb[0].mxu0 %v473
        %v589 = vpop.f32.mrb[0].mxu0
        %v590 = vadd.f32 0.0, %v589
        %v591 = vpop.f32.mrb[0].mxu0
        %592 = vdwg.mxu0
        %v593 = vmax.f32 %v590, 1e-30
        %v594 = vrsqrt.pop %v593
        %v595 = vld [vmem:[#allocation2] sm:$0xff]
        %v597 = vsel %vm471, %v595, 0
        %v600 = vsel %vm471, %v439, 0
        %v603 = vsel %vm471, %v440, 0
        %v606 = vsel %vm471, %v441, 0
        %v609 = vsel %vm471, %v442, 0
        %v612 = vsel %vm471, %v443, 0
        %v615 = vsel %vm471, %v444, 0
        %v618 = vsel %vm471, %v445, 0
        %v621 = vsel %vm471, %v446, 0
        %v624 = vsel %vm471, %v447, 0
        %v627 = vsel %vm471, %v448, 0
        %v630 = vsel %vm471, %v449, 0
        %v633 = vsel %vm471, %v450, 0
        %v636 = vsel %vm471, %v451, 0
        %v639 = vsel %vm471, %v452, 0
        %v642 = vsel %vm471, %v453, 0
        %v645 = vsel %vm471, %v454, 0
        %647 = vmatprep.subr.mxu0 0.0
        %648 = vmatpush1.xpose.msra.mxu0 %v600
        %649 = vmatprep.subr.mxu0 0.0
        %650 = vmatpush1.xpose.msra.mxu0 %v603
        %651 = vmatprep.subr.mxu0 0.0
        %652 = vmatpush1.xpose.msra.mxu0 %v606
        %653 = vmatprep.subr.mxu0 0.0
        %654 = vmatpush1.xpose.msra.mxu0 %v609
        %655 = vmatprep.subr.mxu0 0.0
        %656 = vmatpush1.xpose.msra.mxu0 %v612
        %657 = vmatprep.subr.mxu0 0.0
        %658 = vmatpush1.xpose.msra.mxu0 %v615
        %659 = vmatprep.subr.mxu0 0.0
        %660 = vmatpush1.xpose.msra.mxu0 %v618
        %661 = vmatprep.subr.mxu0 0.0
        %662 = vmatpush1.xpose.msra.mxu0 %v621
        %663 = vmatprep.subr.mxu0 0.0
        %664 = vmatpush1.xpose.msra.mxu0 %v624
        %665 = vmatprep.subr.mxu0 0.0
        %666 = vmatpush1.xpose.msra.mxu0 %v627
        %667 = vmatprep.subr.mxu0 0.0
        %668 = vmatpush1.xpose.msra.mxu0 %v630
        %669 = vmatprep.subr.mxu0 0.0
        %670 = vmatpush1.xpose.msra.mxu0 %v633
        %671 = vmatprep.subr.mxu0 0.0
        %672 = vmatpush1.xpose.msra.mxu0 %v636
        %673 = vmatprep.subr.mxu0 0.0
        %674 = vmatpush1.xpose.msra.mxu0 %v639
        %675 = vmatprep.subr.mxu0 0.0
        %676 = vmatpush1.xpose.msra.mxu0 %v642
        %677 = vmatprep.subr.mxu0 0.0
        %678 = vmatpush1.xpose.msra.mxu0 %v645
        %679 = vmatprep.subr.mxu0 0.0
        %680 = vmatpush1.xpose.msra.mxu0 0.0
        %681 = vmatprep.subr.mxu0 0.0
        %682 = vmatpush1.xpose.msra.mxu0 0.0
        %683 = vmatprep.subr.mxu0 0.0
        %684 = vmatpush1.xpose.msra.mxu0 0.0
        %685 = vmatprep.subr.mxu0 0.0
        %686 = vmatpush1.xpose.msra.mxu0 0.0
        %687 = vmatprep.subr.mxu0 0.0
        %688 = vmatpush1.xpose.msra.mxu0 0.0
        %689 = vmatprep.subr.mxu0 0.0
        %690 = vmatpush1.xpose.msra.mxu0 0.0
        %691 = vmatprep.subr.mxu0 0.0
        %692 = vmatpush1.xpose.msra.mxu0 0.0
        %693 = vmatprep.subr.mxu0 0.0
        %694 = vmatpush1.xpose.msra.mxu0 0.0
        %695 = vmatprep.subr.mxu0 0.0
        %696 = vmatpush1.xpose.msra.mxu0 0.0
        %697 = vmatprep.subr.mxu0 0.0
        %698 = vmatpush1.xpose.msra.mxu0 0.0
        %699 = vmatprep.subr.mxu0 0.0
        %700 = vmatpush1.xpose.msra.mxu0 0.0
        %701 = vmatprep.subr.mxu0 0.0
        %702 = vmatpush1.xpose.msra.mxu0 0.0
        %703 = vmatprep.subr.mxu0 0.0
        %704 = vmatpush1.xpose.msra.mxu0 0.0
        %705 = vmatprep.subr.mxu0 0.0
        %706 = vmatpush1.xpose.msra.mxu0 0.0
        %707 = vmatprep.subr.mxu0 0.0
        %708 = vmatpush1.xpose.msra.mxu0 0.0
        %709 = vmatprep.subr.mxu0 0.0
        %710 = vmatpush1.xpose.msra.mxu0 0.0
        %711 = vmatprep.mubr.f32.mxu0 0.0
        %712 = vmatmul.mubr.f32.gmra.mrb[0].mxu0 %v597
        %v713 = vpop.f32.mrb[0].mxu0
        %v714 = vadd.f32 0.0, %v713
        %v715 = vpop.f32.mrb[0].mxu0
        %716 = vdwg.mxu0
        %v717 = vlaneseq
        %v718 = vshrl.u32 %v717, 7
        %v719 = vsub.s32 0, %v718
        %v720 = vrot.slane %v594, %v719
        %v721 = vmul.f32 %v714, %v720
        %v722 = vld [vmem:[%s266] sm:$0x1]
        %v723 = vlaneseq
        %v724 = vshrl.u32 %v723, 7
        %v725 = vlaneseq
        %v726 = vshrl.u32 %v725, 7
        %v727 = vsub.s32 0, %v726
        %v728 = vrot.slane %v722, %v727
        %vm729 = vcmp.eq.s32.totalorder %v724, %v728
        %v730 = vsel %vm729, 1, 0
        %v731 = vcvt.s32.f32 %v730
        %v732 = vsel %vm729, %v721, 0.0
        %v733 = vrot.slane %v732, 4
        %v734 = vadd.f32 %v732, %v733
        %v735 = vrot.slane %v734, 2
        %v736 = vadd.f32 %v734, %v735
        %v737 = vrot.slane %v736, 1
        %v738 = vadd.f32 %v736, %v737
        %v739 = vmul.f32 %v738, 2.0
        %v740 = vsub.f32 2.0, %v739
        %v741 = vmax.f32 %v740, 0.0
        %v742 = vrsqrt.pop %v741
        %v743 = vmul.f32 %v741, %v742
        %vm744 = vcmp.eq.f32.partialorder %v741, inf
        %v745 = vsel %vm744, %v741, %v743
        %vm746 = vcmp.eq.f32.partialorder %v741, 0.0
        %v747 = vand.u32 %v741, 2147483648
        %v748 = vsel %vm746, %v747, %v745
        %vm749 = vcmask 1040384
        %v750 = vsel %vm749, %v748, 1.0
        %751 = vmatprep.subr.mxu0 0.0
        %752 = vmatpush1.xpose.msra.mxu0 %v731
        %753 = vmatprep.subr.mxu0 0.0
        %754 = vmatpush1.xpose.msra.mxu0 0.0
        %755 = vmatprep.subr.mxu0 0.0
        %756 = vmatpush1.xpose.msra.mxu0 0.0
        %757 = vmatprep.subr.mxu0 0.0
        %758 = vmatpush1.xpose.msra.mxu0 0.0
        %759 = vmatprep.subr.mxu0 0.0
        %760 = vmatpush1.xpose.msra.mxu0 0.0
        %761 = vmatprep.subr.mxu0 0.0
        %762 = vmatpush1.xpose.msra.mxu0 0.0
        %763 = vmatprep.subr.mxu0 0.0
        %764 = vmatpush1.xpose.msra.mxu0 0.0
        %765 = vmatprep.subr.mxu0 0.0
        %766 = vmatpush1.xpose.msra.mxu0 0.0
        %767 = vmatprep.subr.mxu0 0.0
        %768 = vmatpush1.xpose.msra.mxu0 0.0
        %769 = vmatprep.subr.mxu0 0.0
        %770 = vmatpush1.xpose.msra.mxu0 0.0
        %771 = vmatprep.subr.mxu0 0.0
        %772 = vmatpush1.xpose.msra.mxu0 0.0
        %773 = vmatprep.subr.mxu0 0.0
        %774 = vmatpush1.xpose.msra.mxu0 0.0
        %775 = vmatprep.subr.mxu0 0.0
        %776 = vmatpush1.xpose.msra.mxu0 0.0
        %777 = vmatprep.subr.mxu0 0.0
        %778 = vmatpush1.xpose.msra.mxu0 0.0
        %779 = vmatprep.subr.mxu0 0.0
        %780 = vmatpush1.xpose.msra.mxu0 0.0
        %781 = vmatprep.subr.mxu0 0.0
        %782 = vmatpush1.xpose.msra.mxu0 0.0
        %783 = vmatprep.subr.mxu0 0.0
        %784 = vmatpush1.xpose.msra.mxu0 0.0
        %785 = vmatprep.subr.mxu0 0.0
        %786 = vmatpush1.xpose.msra.mxu0 0.0
        %787 = vmatprep.subr.mxu0 0.0
        %788 = vmatpush1.xpose.msra.mxu0 0.0
        %789 = vmatprep.subr.mxu0 0.0
        %790 = vmatpush1.xpose.msra.mxu0 0.0
        %791 = vmatprep.subr.mxu0 0.0
        %792 = vmatpush1.xpose.msra.mxu0 0.0
        %793 = vmatprep.subr.mxu0 0.0
        %794 = vmatpush1.xpose.msra.mxu0 0.0
        %795 = vmatprep.subr.mxu0 0.0
        %796 = vmatpush1.xpose.msra.mxu0 0.0
        %797 = vmatprep.subr.mxu0 0.0
        %798 = vmatpush1.xpose.msra.mxu0 0.0
        %799 = vmatprep.subr.mxu0 0.0
        %800 = vmatpush1.xpose.msra.mxu0 0.0
        %801 = vmatprep.subr.mxu0 0.0
        %802 = vmatpush1.xpose.msra.mxu0 0.0
        %803 = vmatprep.subr.mxu0 0.0
        %804 = vmatpush1.xpose.msra.mxu0 0.0
        %805 = vmatprep.subr.mxu0 0.0
        %806 = vmatpush1.xpose.msra.mxu0 0.0
        %807 = vmatprep.subr.mxu0 0.0
        %808 = vmatpush1.xpose.msra.mxu0 0.0
        %809 = vmatprep.subr.mxu0 0.0
        %810 = vmatpush1.xpose.msra.mxu0 0.0
        %811 = vmatprep.subr.mxu0 0.0
        %812 = vmatpush1.xpose.msra.mxu0 0.0
        %813 = vmatprep.subr.mxu0 0.0
        %814 = vmatpush1.xpose.msra.mxu0 0.0
        %815 = vmatprep.mubr.f32.mxu0 0.0
        %816 = vmatmul.mubr.f32.gmra.mrb[0].mxu0 %v750
        %v817 = vpop.f32.mrb[0].mxu0
        %v818 = vadd.f32 0.0, %v817
        %v819 = vpop.f32.mrb[0].mxu0
        %820 = vdwg.mxu0
        %v821 = vld [vmem:[%s292] sm:$0x3]
        %v822 = vadd.f32 %v821, %v818
        %vm823 = vcmask 58368
        %824 = vst.msk [vmem:[%s292] sm:$0x3] %vm823, %v822
        %s825 = sand.u32 %s129, 1
        %s826 = scalar_lea.sflag [#allocation5], %s825
        %s827 = sand.u32 %s129, 1
        %s828 = smul.addr %s827, 2
        %s829 = scalar_lea.vmem [#allocation10], %s828
        // Predicated region
        $region49: #{tpu_custom_call.1} parent=31 // pred_check
          %p830 = pneg %p139
        $region50: #{tpu_custom_call.1} parent=31 // pred_check_branch
          %832 = sbr.rel (%p830) target = $region52
        $region51: #{tpu_custom_call.1} parent=31 // pred_region
          %s834 = ssub.s32 32, 32
          %835 = vsyncadd %s826, %s834
          %s836 = smul.addr %s28, 32
          %s837 = scalar_lea.hbm %s3, %s836
          %s839 = sshll.u32 %s829, 4
          %s840 = int_to_ptr.vmem [resolvable:$true] %s839
          %842 = dma.vmem_to_hbm [thread:$0]  %s840, 32, %s837, %s826
        $region52: #{tpu_custom_call.1} parent=31 // pred_fallthru
          _
        // Predicated region
        $region53: #{tpu_custom_call.1} parent=31 // pred_check
          %p843 = pneg %p160
        $region54: #{tpu_custom_call.1} parent=31 // pred_check_branch
          %845 = sbr.rel (%p843) target = $region56
        $region55: #{tpu_custom_call.1} parent=31 // pred_region
          %s847 = ssub.s32 16, 16
          %848 = vsyncadd [#allocation6], %s847
          %851 = dma.smem_to_hbm [#allocation11], 16, %s4, [#allocation6]
        $region56: #{tpu_custom_call.1} parent=31 // pred_fallthru
          _
        // Predicated region
        $region57: #{tpu_custom_call.1} parent=31 // pred_check
          %p852 = pneg %p160
        $region58: #{tpu_custom_call.1} parent=31 // pred_check_branch
          %854 = sbr.rel (%p852) target = $region60
        $region59: #{tpu_custom_call.1} parent=31 // pred_region
          %855 = dma.done [#allocation6], 16
        $region60: #{tpu_custom_call.1} parent=31 // pred_fallthru
          _
        %856 = sfence
      $region32: #{tpu_custom_call.1} parent=5 // pred_fallthru
        _
      %p857 = scmp.le.s32.totalorder 2, %s19
      // Predicated region
      $region61: #{tpu_custom_call.1} parent=5 // pred_check
        %p858 = pneg %p857
      $region62: #{tpu_custom_call.1} parent=5 // pred_check_branch
        %860 = sbr.rel (%p858) target = $region64
      $region63: #{tpu_custom_call.1} parent=5 // pred_region
        %s861 = ssub.s32 %s19, 2
        // Predicated region
        $region65: #{tpu_custom_call.1} parent=63 // pred_check
          %p862 = pneg %p145
        $region66: #{tpu_custom_call.1} parent=63 // pred_check_branch
          %864 = sbr.rel (%p862) target = $region68
        $region67: #{tpu_custom_call.1} parent=63 // pred_region
          %s865 = sand.u32 %s130, 1
          %s866 = scalar_lea.sflag [#allocation5], %s865
          %s867 = sand.u32 %s130, 1
          %s868 = smul.addr %s867, 2
          %s869 = scalar_lea.vmem [#allocation10], %s868
          %870 = dma.done %s866, 32
        $region68: #{tpu_custom_call.1} parent=63 // pred_fallthru
          _
      $region64: #{tpu_custom_call.1} parent=5 // pred_fallthru
        _
    $region6: #{tpu_custom_call.1} parent=1 // loop_footer
      %s23 = sadd.s32 1, %s19
    $region7: #{tpu_custom_call.1} parent=1 // loop_footer_branch
      %18 = sbr.rel target = $region3
    $region8: #{tpu_custom_call.1} parent=1 // loop_exit
      _
    %871 = vsyncpa [#allocation4], 1
    %s872 = scalar_lea.sflag [#allocation4], 1
    %873 = vsyncpa %s872, 1
    %874 = vsyncpa [#allocation8], 1
    %875 = vsyncpa [#allocation5], 1
    %s876 = scalar_lea.sflag [#allocation5], 1
    %877 = vsyncpa %s876, 1
    %878 = vsyncpa [#allocation6], 1
    %s879 = scalar_lea.sflag [#allocation6], 1
    %880 = vsyncpa %s879, 1

</llo_original>
